<compile_context>
chip_gen: v6e
topology: v6e:2x2x1
jax: 0.10.0
libtpu: 0.0.40
codegen_flags: <defaults>
</compile_context>

<pallas_src>
import functools

import jax
import jax.numpy as jnp
from jax import lax
from jax.experimental import pallas as pl
from jax.experimental.pallas import tpu as pltpu


# --------------------------- pltpu.roll convention ---------------------------

@functools.lru_cache(maxsize=None)
def _roll_sign():
    """+1 if pltpu.roll follows the jnp.roll shift convention, else -1.

    Tiny one-time probe so the conv shift direction is correct regardless of
    the rotate-op convention of the installed Mosaic build.
    """
    x = jnp.arange(8 * 128, dtype=jnp.float32).reshape(8, 128)

    def k(x_ref, o_ref):
        o_ref[...] = pltpu.roll(x_ref[...], 1, 1)

    y = pl.pallas_call(
        k, out_shape=jax.ShapeDtypeStruct((8, 128), jnp.float32))(x)
    return 1 if bool(jnp.all(y == jnp.roll(x, 1, axis=1))) else -1


# ------------------------------ fused kernel --------------------------------

def _make_osa_kernel(H, W, in_ch, stage_ch, concat_ch, L, B, roll_sign):
    HW = H * W

    def _shift(a, off):
        # a_shifted[:, p] = a[:, (p + off) mod HW]; wrapped entries are masked.
        if off == 0:
            return a
        return pltpu.roll(a, (roll_sign * (-off)) % HW, 1)

    def kernel(*refs):
        x_ref = refs[0]                                   # (B, in_ch, HW) f32
        layer_refs = refs[1:1 + 2 * L]                    # [w9 bf16, bias f32]*L
        cat_refs = refs[1 + 2 * L:2 + 3 * L]              # (Cc, c_f) bf16 per feat
        bc_ref, wf_ref, bf_ref = refs[2 + 3 * L:5 + 3 * L]
        o_ref = refs[5 + 3 * L]                           # (B, Cc, HW) f32

        # Static border masks for the 9 conv taps (hoisted out of all loops).
        pix = lax.broadcasted_iota(jnp.int32, (1, HW), 1)
        row, col = pix // W, pix % W
        taps = []                                         # [(offset, mask|None)]
        for dh in (-1, 0, 1):
            for dw in (-1, 0, 1):
                m = None
                if dh < 0:
                    m = row >= 1
                elif dh > 0:
                    m = row < (H - 1)
                if dw < 0:
                    m = (col >= 1) if m is None else (m & (col >= 1))
                elif dw > 0:
                    m = (col < (W - 1)) if m is None else (m & (col < (W - 1)))
                taps.append((dh * W + dw, m))

        for b in range(B):                                # images in this block
            x = x_ref[b].astype(jnp.bfloat16)             # (in_ch, HW)
            feats = [x]
            cur = x
            for l in range(L):
                w9_ref = layer_refs[2 * l]                # (9, stage_ch, cin) bf16
                bias_ref = layer_refs[2 * l + 1]          # (stage_ch, 1)      f32
                acc = jnp.zeros((stage_ch, HW), jnp.float32)
                for k, (off, m) in enumerate(taps):
                    tap = _shift(cur, off)
                    if m is not None:
                        tap = jnp.where(m, tap, jnp.zeros_like(tap))
                    acc = acc + jnp.dot(w9_ref[k], tap,
                                        preferred_element_type=jnp.float32)
                y = jnp.maximum(acc + bias_ref[...], 0.0).astype(jnp.bfloat16)
                feats.append(y)
                cur = y

            # 1x1 concat conv + folded-BN bias + ReLU, K split over OSA groups.
            xt = jnp.zeros((concat_ch, HW), jnp.float32)
            for f in range(L + 1):
                xt = xt + jnp.dot(cat_refs[f][...], feats[f],
                                  preferred_element_type=jnp.float32)
            xt = jnp.maximum(xt + bc_ref[...], 0.0)       # (Cc, HW) f32

            # eSE: gate = hsigmoid(Wf @ avgpool(xt) + bf).  Computed as the
            # lane-mean of (Wf @ xt) so every matmul stays well shaped (no
            # N=1 matvec).  Wf is intentionally kept f32 (tiny, more accurate).
            wx = jnp.dot(wf_ref[...], xt, preferred_element_type=jnp.float32)
            g = jnp.sum(wx, axis=1, keepdims=True) * (1.0 / HW) + bf_ref[...]
            gate = jnp.clip(g + 3.0, 0.0, 6.0) * (1.0 / 6.0)
            o_ref[b] = xt * gate

    return kernel


# ------------------------------ pallas_call glue ----------------------------

def _choose_batch_block(N):
    for B in (8, 4, 2, 1):
        if N % B == 0:
            return B
    return 1


def osa_module_forward(x_nchw, params):
    """Fused OSA forward.  NCHW in / NCHW out (PyTorch convention)."""
    return _osa_forward(x_nchw, params, _roll_sign())


@functools.partial(jax.jit, static_argnums=(2,))
def _osa_forward(x_nchw, params, roll_sign):
    N, in_ch, H, W = x_nchw.shape
    HW = H * W
    layers = params["layers"]
    L = len(layers)
    stage_ch = layers[0][0].shape[-1]
    wc, sc, bc = params["concat"]
    wf, bf = params["ese"]
    cat_ch, concat_ch = wc.shape

    B = _choose_batch_block(N)

    # Free reshape: NCHW -> (N, C, H*W).  No transpose, no extra HBM pass.
    x = x_nchw.reshape(N, in_ch, HW)

    def rep(arr):  # grid-invariant (replicated) operand, full-array block
        nd = arr.ndim
        return pl.BlockSpec(arr.shape, lambda n, nd=nd: (0,) * nd)

    flat_in = [x]
    in_specs = [pl.BlockSpec((B, in_ch, HW), lambda n: (n, 0, 0))]

    flops = 0
    cin = in_ch
    for (w, s, b) in layers:
        # Fold BN scale into the conv weight; pack as (9, out, cin) so each
        # tap is a clean (stage_ch, cin) MXU operand.
        w9 = (jnp.transpose(w * s[0], (0, 1, 3, 2))        # (3,3,out,cin)
              .reshape(9, stage_ch, cin).astype(jnp.bfloat16))
        bias = b[0].reshape(stage_ch, 1)
        flat_in += [w9, bias]
        in_specs += [rep(w9), rep(bias)]
        flops += 2 * HW * 9 * cin * stage_ch
        cin = stage_ch

    # Fold BN scale into the 1x1 concat weight; split K over the OSA groups.
    wcT = jnp.transpose(wc * sc[0])                        # (concat_ch, cat_ch)
    group_ch = [in_ch] + [stage_ch] * L
    off = 0
    for c_f in group_ch:
        chunk = wcT[:, off:off + c_f].astype(jnp.bfloat16)
        flat_in.append(chunk)
        in_specs.append(rep(chunk))
        off += c_f
    flops += 2 * HW * cat_ch * concat_ch

    bc_col = bc[0].reshape(concat_ch, 1)
    wf_oi = jnp.transpose(wf)                              # (out, in) f32
    bf_col = bf[0].reshape(concat_ch, 1)
    flat_in += [bc_col, wf_oi, bf_col]
    in_specs += [rep(bc_col), rep(wf_oi), rep(bf_col)]
    flops += 2 * HW * concat_ch * concat_ch                # eSE fc fused over pixels
    flops *= N

    weight_bytes = sum(int(a.size) * a.dtype.itemsize for a in flat_in[1:])
    bytes_accessed = int(x.size * x.dtype.itemsize
                         + N * concat_ch * HW * 4 + weight_bytes)

    # Scoped-VMEM budget: double-buffered in/out blocks + replicated operands +
    # per-image live intermediates, 2x headroom, clamped to a range that is
    # safe on v5e/v6e (128 MiB physical) and v7x (64 MiB physical).
    interm_bytes = B * ((in_ch + L * stage_ch) * HW * 2    # bf16 features
                        + 2 * concat_ch * HW * 4           # xt + gated output
                        + stage_ch * HW * 4)               # conv accumulator
    block_bytes = 2 * (B * in_ch * HW * 4 + B * concat_ch * HW * 4)
    vmem_limit = int(min(max(2 * (block_bytes + 2 * weight_bytes + interm_bytes),
                             32 * 2**20), 48 * 2**20))

    kernel = _make_osa_kernel(H, W, in_ch, stage_ch, concat_ch, L, B, roll_sign)

    out = pl.pallas_call(
        kernel,
        out_shape=jax.ShapeDtypeStruct((N, concat_ch, HW), jnp.float32),
        grid=(N // B,),
        in_specs=in_specs,
        out_specs=pl.BlockSpec((B, concat_ch, HW), lambda n: (n, 0, 0)),
        compiler_params=pltpu.CompilerParams(
            dimension_semantics=("parallel",),
            vmem_limit_bytes=vmem_limit),
        cost_estimate=pl.CostEstimate(flops=flops, transcendentals=0,
                                      bytes_accessed=bytes_accessed),
    )(*flat_in)
    return out.reshape(N, concat_ch, H, W)                 # free reshape to NCHW


# ----------------------------- parameter setup ------------------------------

def fold_bn(gamma, beta, mean, var, eps=1e-5):
    scale = gamma / jnp.sqrt(var + eps)
    bias = beta - mean * scale
    return scale[None, :], bias[None, :]                   # (1, C)


def init_osa_params(key, in_ch, stage_ch, concat_ch, layer_per_block):
    params = {"layers": [], "concat": None, "ese": None}
    cin = in_ch
    for _ in range(layer_per_block):
        key, k1, k2, k3, k4, k5 = jax.random.split(key, 6)
        w = jax.random.normal(k1, (3, 3, cin, stage_ch), jnp.float32) * 0.1
        gamma = 1.0 + 0.1 * jax.random.normal(k2, (stage_ch,), jnp.float32)
        beta = 0.1 * jax.random.normal(k3, (stage_ch,), jnp.float32)
        mean = 0.1 * jax.random.normal(k4, (stage_ch,), jnp.float32)
        var = jnp.abs(jax.random.normal(k5, (stage_ch,), jnp.float32)) + 0.5
        s, b = fold_bn(gamma, beta, mean, var)
        params["layers"].append((w, s, b))
        cin = stage_ch
    cat_ch = in_ch + layer_per_block * stage_ch
    key, k1, k2, k3, k4, k5 = jax.random.split(key, 6)
    wc = jax.random.normal(k1, (cat_ch, concat_ch), jnp.float32) * 0.1
    gamma = 1.0 + 0.1 * jax.random.normal(k2, (concat_ch,), jnp.float32)
    beta = 0.1 * jax.random.normal(k3, (concat_ch,), jnp.float32)
    mean = 0.1 * jax.random.normal(k4, (concat_ch,), jnp.float32)
    var = jnp.abs(jax.random.normal(k5, (concat_ch,), jnp.float32)) + 0.5
    sc, bc = fold_bn(gamma, beta, mean, var)
    params["concat"] = (wc, sc, bc)
    key, k1, k2 = jax.random.split(key, 3)
    wf = jax.random.normal(k1, (concat_ch, concat_ch), jnp.float32) * 0.1
    bf = 0.1 * jax.random.normal(k2, (1, concat_ch), jnp.float32)
    params["ese"] = (wf, bf)
    return params


# ------------------------------- reference ----------------------------------

def osa_module_reference(x_nchw, params):
    # Pure-JAX/XLA reference with the SAME folded-BN + bf16-matmul /
    # f32-accumulate precision policy as the kernel, so the comparison
    # isolates kernel structure rather than the precision choice.
    x = jnp.transpose(x_nchw, (0, 2, 3, 1)).astype(jnp.bfloat16)   # NHWC
    feats = [x]
    h = x
    for (w, s, b) in params["layers"]:
        wfold = (w * s[0]).astype(jnp.bfloat16)
        y = lax.conv_general_dilated(
            h, wfold, (1, 1), "SAME",
            dimension_numbers=("NHWC", "HWIO", "NHWC"),
            preferred_element_type=jnp.float32)
        h = jnp.maximum(y + b[0], 0.0).astype(jnp.bfloat16)
        feats.append(h)
    cat = jnp.concatenate(feats, axis=-1)
    wc, sc, bc = params["concat"]
    xt = jnp.einsum("nhwc,cd->nhwd", cat, (wc * sc[0]).astype(jnp.bfloat16),
                    preferred_element_type=jnp.float32)
    xt = jnp.maximum(xt + bc[0], 0.0)
    wf, bf = params["ese"]
    m = jnp.mean(xt, axis=(1, 2))                          # (N, Cc)
    gate = jnp.clip(m @ wf + bf + 3.0, 0.0, 6.0) / 6.0     # hsigmoid
    xt = xt * gate[:, None, None, :]
    return jnp.transpose(xt, (0, 3, 1, 2))


if __name__ == "__main__":
    # Small shapes consistent with the module: N=2, in_ch=8, H=W=16,
    # stage_ch=16, concat_ch=32, layer_per_block=3.
    N, in_ch, H, W = 2, 8, 16, 16
    stage_ch, concat_ch, layer_per_block = 16, 32, 3

    key = jax.random.PRNGKey(0)
    key, kx = jax.random.split(key)
    x = jax.random.normal(kx, (N, in_ch, H, W), jnp.float32)
    params = init_osa_params(key, in_ch, stage_ch, concat_ch, layer_per_block)

    out = jax.block_until_ready(osa_module_forward(x, params))
    ref = osa_module_reference(x, params)

    assert out.shape == (N, concat_ch, H, W), out.shape
    err = float(jnp.max(jnp.abs(out - ref)))
    assert jnp.allclose(out, ref, atol=1e-2, rtol=1e-2), err

    print("KERNEL_OK")
</pallas_src>

<mosaic_0001>
module attributes {stable_mosaic.version = 11 : i64} {
  func.func @k(%arg0: memref<8x128xf32, #tpu.memory_space<vmem>>, %arg1: memref<8x128xf32, #tpu.memory_space<vmem>>) attributes {dimension_semantics = [], scalar_prefetch = 0 : i64, scratch_operands = 0 : i64, tpu.core_type = #tpu.core_type<tc>} {
    %c0 = arith.constant 0 : index
    %c0_0 = arith.constant 0 : index
    %0 = vector.load %arg0[%c0, %c0_0] : memref<8x128xf32, #tpu.memory_space<vmem>>, vector<8x128xf32>
    %c1_i32 = arith.constant 1 : i32
    %1 = tpu.dynamic_rotate %0 by %c1_i32 dim 1 : vector<8x128xf32>, i32 -> vector<8x128xf32>
    %c0_1 = arith.constant 0 : index
    %c0_2 = arith.constant 0 : index
    %2 = vector.load %arg1[%c0_1, %c0_2] : memref<8x128xf32, #tpu.memory_space<vmem>>, vector<8x128xf32>
    tpu.vector_store %arg1[%c0_1, %c0_2], %1 {strides = array<i32>} : memref<8x128xf32, #tpu.memory_space<vmem>>, vector<8x128xf32>,
    return
  }
}

</mosaic_0001>

<llo_original>
// kernel: tpu_custom_call.1
$region0: #{tpu_custom_call.1}
  #allocation0 [shape = 'u32[]', space=smem, size = 0x4, offset = 0x4, fixed_abs, tag = 'smem constant byte address 0x4 - core index']
  #allocation1 [shape = 'u32[144,128]{1,0:T(1,128)}', space=vmem, size = 0x12000, scoped, tag = 'internal scratch']
  %s0 = inlined_call_operand.hbm [shape: f32[8,128], index: 0, kind: input, shape index: {}]
  %s1 = inlined_call_operand.hbm [shape: f32[8,128], index: 1, kind: output, shape index: {}]
  %s2 = sld [smem:[#allocation0]]
  $region18: #{tpu_custom_call.1} parent=0
    _
  %s4 = ssub.s32 1, %s2
  %s5 = scalar_select 0, %s4, %s2
  $region1: #{tpu_custom_call.1} parent=0
    #allocation2 [shape = 'u8[4096]{0}', space=vmem, size = 0x1000, scoped, tag = 'input window, operand 0, single buffered']
    #allocation3 [shape = 's32[1]{0}', space=sflag, size = 0x4, scoped, tag = 'scoped memory for tpu_custom_call.1']
    #allocation4 [shape = 's32[1]{0}', space=sflag, size = 0x4, scoped, tag = 'scoped memory for tpu_custom_call.1']
    #allocation5 [shape = 'u8[4096]{0}', space=vmem, size = 0x1000, scoped, tag = 'output window, operand 0, single buffered']
    %6 = vsyncpa [#allocation3], 0
    %7 = vsyncpa [#allocation4], 0
    // Predicated region
    $region2: #{tpu_custom_call.1} parent=1 // pred_check
      _
    $region3: #{tpu_custom_call.1} parent=1 // pred_check_branch
      %9 = sbr.rel (0) target = $region5
    $region4: #{tpu_custom_call.1} parent=1 // pred_region
      %s11 = ssub.s32 128, 128
      %12 = vsyncadd [#allocation3], %s11
      %s14 = sshll.u32 [#allocation2], 4
      %s15 = int_to_ptr.vmem [resolvable:$true] %s14
      %17 = dma.hbm_to_vmem [thread:$0]  %s0, 128, %s15, [#allocation3]
    $region5: #{tpu_custom_call.1} parent=1 // pred_fallthru
      _
    // Predicated region
    $region6: #{tpu_custom_call.1} parent=1 // pred_check
      _
    $region7: #{tpu_custom_call.1} parent=1 // pred_check_branch
      %19 = sbr.rel (0) target = $region9
    $region8: #{tpu_custom_call.1} parent=1 // pred_region
      %20 = dma.done [#allocation3], 128
    $region9: #{tpu_custom_call.1} parent=1 // pred_fallthru
      _
    %v21 = vld [vmem:[#allocation2] sm:$0xff]
    %22 = vrot.lane.b32.xlu0 %v21, 1
    %v23 = vpop.permute.xlu0 %22
    %24 = vst [vmem:[#allocation5] sm:$0xff] %v23
    // Predicated region
    $region10: #{tpu_custom_call.1} parent=1 // pred_check
      _
    $region11: #{tpu_custom_call.1} parent=1 // pred_check_branch
      %26 = sbr.rel (0) target = $region13
    $region12: #{tpu_custom_call.1} parent=1 // pred_region
      %s28 = ssub.s32 128, 128
      %29 = vsyncadd [#allocation4], %s28
      %s31 = sshll.u32 [#allocation5], 4
      %s32 = int_to_ptr.vmem [resolvable:$true] %s31
      %34 = dma.vmem_to_hbm [thread:$0]  %s32, 128, %s1, [#allocation4]
    $region13: #{tpu_custom_call.1} parent=1 // pred_fallthru
      _
    // Predicated region
    $region14: #{tpu_custom_call.1} parent=1 // pred_check
      _
    $region15: #{tpu_custom_call.1} parent=1 // pred_check_branch
      %36 = sbr.rel (0) target = $region17
    $region16: #{tpu_custom_call.1} parent=1 // pred_region
      %37 = dma.done [#allocation4], 128
    $region17: #{tpu_custom_call.1} parent=1 // pred_fallthru
      _
    %38 = vsyncpa [#allocation3], 1
    %39 = vsyncpa [#allocation4], 1

</llo_original>
